<compile_context>
chip_gen: v6e
topology: v6e:2x2x1
jax: 0.10.0
libtpu: 0.0.40
codegen_flags: <defaults>
</compile_context>

<pallas_src>
import jax
import jax.numpy as jnp
from jax.experimental import pallas as pl
from jax.experimental.pallas import tpu as pltpu


def _self_attention_kernel(q_ref, vals_ref, w1_ref, b1_ref, vw_ref, vb_ref,
                           ctx_ref, score_ref):
    TB, S, IN = q_ref.shape
    DV = vals_ref.shape[2]

    # --- W1(query) -> tanh : single flattened MXU matmul over TB*S rows -----
    q2 = q_ref[...].reshape(TB * S, IN)                       # (TB*S, IN)
    w1 = w1_ref[...].astype(q2.dtype)                         # match operand dtype
    h = jnp.tanh(
        jnp.dot(q2, w1, preferred_element_type=jnp.float32)   # f32 accumulation
        + b1_ref[...].astype(jnp.float32)                     # (1, OUT) broadcast
    )                                                         # (TB*S, OUT) f32

    # --- V(.) has output width 1: VPU multiply + lane reduction (no MXU) ----
    logit_col = (jnp.sum(h * vw_ref[...].astype(jnp.float32),
                         axis=-1, keepdims=True)
                 + vb_ref[...].astype(jnp.float32))           # (TB*S, 1)
    score3 = jax.nn.sigmoid(logit_col).reshape(TB, S, 1)      # f32

    # --- normalize over the sequence axis (PyTorch dim=1), all in f32 -------
    denom = jnp.sum(score3, axis=1, keepdims=True)            # (TB, 1, 1)
    attn3 = score3 * pl.reciprocal(denom, approx=False)       # (TB, S, 1) f32

    # --- context = sum_s attn * values (values kept in native dtype) --------
    vals = vals_ref[...]                                      # (TB, S, DV)
    if DV >= 128:
        # Large DV: batched matvec on the MXU, operands in values' dtype,
        # accumulation in f32.
        attn2 = attn3.reshape(TB, S).astype(vals.dtype)
        ctx = jax.lax.dot_general(
            attn2, vals,
            dimension_numbers=(((1,), (1,)), ((0,), (0,))),
            preferred_element_type=jnp.float32)               # (TB, DV) f32
    else:
        # Small DV: VPU broadcast-mul + sublane reduce.
        if vals.dtype == jnp.float32:
            ctx = jnp.sum(attn3 * vals, axis=1)               # f32 throughout
        else:
            # multiply in bf16, accumulate the S-reduction in f32
            ctx = jnp.sum((attn3.astype(vals.dtype) * vals).astype(jnp.float32),
                          axis=1)                             # (TB, DV) f32

    ctx_ref[...] = ctx.astype(ctx_ref.dtype)
    # Lane-dense score store: (TB, S) with S on the lane axis.
    score_ref[...] = score3.reshape(TB, S).astype(score_ref.dtype)


def _detect_vmem_bytes():
    """Physical VMEM per TensorCore; conservative fallback = v7x (64 MiB)."""
    try:
        info = pltpu.get_tpu_info()
        for attr in ("vmem_capacity_bytes", "vmem_bytes", "vmem_size_bytes"):
            v = getattr(info, attr, None)
            if v:
                return int(v)
    except Exception:
        pass
    return 64 * 1024 * 1024


def _choose_tb(B, S, IN, OUT, DV, q_bytes, v_bytes, o_bytes, vmem_budget):
    """VMEM-driven batch-tile size for a bandwidth-bound kernel."""
    # Per-batch-row VMEM footprint of one grid step:
    #   2x double-buffered input blocks (query + values)
    # + f32 in-kernel intermediates (flattened query / h / weighted product)
    # + 2x double-buffered output tiles (context + score).
    per_row = (2 * S * (IN * q_bytes + DV * v_bytes)
               + S * (IN + OUT + DV) * 4
               + 2 * (DV + S) * o_bytes)
    tb_cap = max(1, vmem_budget // per_row)

    if B < 16:
        # Tiny batch: one full-dim block (tb == B keeps the (tb, ·) output
        # tiles legal without 8-alignment).
        return B

    # Largest tile that fits, but at least enough rows to fill the MXU
    # (256-wide on v6e/v7x; this also covers v5e's 128).
    tb = max(min(tb_cap, B), pl.cdiv(256, S))
    # Keep >= 2 grid steps so v7x's two TensorCores can split the batch axis.
    tb = min(tb, pl.cdiv(B, 2))
    # 8-align the sublane dim of the (tb, DV) / (tb, S) output tiles.  A
    # ragged last block (B % tb != 0) is handled by Pallas (reads of the tail
    # rows are garbage, their writes are discarded) and is safe because all
    # math is per-batch-row.
    tb = max(8, (tb // 8) * 8)
    return tb


def self_attention(query, values, w1, b1, vw, vb, *,
                   block_batch=None, use_bf16=True):
    """query: (B, S, IN), values: (B, S, DV).
    w1: (IN, OUT), b1: (OUT,), vw: (OUT, 1), vb: (1,).
    Returns (context (B, DV), score (B, S, 1)) matching the PyTorch module."""
    B, S, IN = query.shape
    DV = values.shape[2]
    OUT = w1.shape[1]
    out_dtype = query.dtype

    if use_bf16:
        # Halve the HBM bytes of the two dominant streams of a memory-bound
        # kernel.  Weights stay f32 (tiny); outputs stay in the original dtype.
        query = query.astype(jnp.bfloat16)
        values = values.astype(jnp.bfloat16)

    q_bytes = query.dtype.itemsize
    v_bytes = values.dtype.itemsize
    o_bytes = jnp.dtype(out_dtype).itemsize

    phys_vmem = _detect_vmem_bytes()
    # Explicit scoped-VMEM limit with ~30% headroom (v5e's 16 MiB and
    # v6e/v7x's 32 MiB defaults are too small for roofline-sized tiles).
    vmem_limit = min(int(phys_vmem * 0.7), 100 * 1024 * 1024)
    tile_budget = int(vmem_limit * 0.75)

    if block_batch is not None:
        tb = block_batch
    else:
        tb = _choose_tb(B, S, IN, OUT, DV, q_bytes, v_bytes, o_bytes,
                        tile_budget)

    n_blocks = pl.cdiv(B, tb)
    # NOTE: no jnp.pad here — a ragged last block is handled by Pallas and is
    # correct because score normalization and the context sum never mix rows.

    b1_2d = b1.reshape(1, OUT)
    vw_row = vw.reshape(1, OUT)   # row layout for the lane reduction
    vb_2d = vb.reshape(1, 1)

    grid_spec = pltpu.PrefetchScalarGridSpec(
        num_scalar_prefetch=0,
        grid=(n_blocks,),
        in_specs=[
            pl.BlockSpec((tb, S, IN), lambda b: (b, 0, 0)),   # query
            pl.BlockSpec((tb, S, DV), lambda b: (b, 0, 0)),   # values
            pl.BlockSpec((IN, OUT), lambda b: (0, 0)),        # W1 weight
            pl.BlockSpec((1, OUT), lambda b: (0, 0)),         # W1 bias
            pl.BlockSpec((1, OUT), lambda b: (0, 0)),         # V weight (row)
            pl.BlockSpec((1, 1), lambda b: (0, 0)),           # V bias
        ],
        out_specs=[
            pl.BlockSpec((tb, DV), lambda b: (b, 0)),         # context
            pl.BlockSpec((tb, S), lambda b: (b, 0)),          # score (lane-dense)
        ],
    )

    ctx, score = pl.pallas_call(
        _self_attention_kernel,
        out_shape=(
            jax.ShapeDtypeStruct((B, DV), out_dtype),
            jax.ShapeDtypeStruct((B, S), out_dtype),
        ),
        grid_spec=grid_spec,
        compiler_params=pltpu.CompilerParams(
            dimension_semantics=("parallel",),
            vmem_limit_bytes=vmem_limit),
    )(query, values, w1, b1_2d, vw_row, vb_2d)

    score = score.reshape(B, S, 1)   # match PyTorch's (B, S, 1) score
    return ctx, score


def _reference(query, values, w1, b1, vw, vb):
    h = jnp.tanh(query @ w1 + b1)
    score = jax.nn.sigmoid(h @ vw + vb)                 # (B, S, 1)
    attn = score / jnp.sum(score, axis=1, keepdims=True)
    ctx = jnp.sum(attn * values, axis=1)                # (B, DV)
    return ctx, score


if __name__ == "__main__":
    B, S, IN, OUT, DV = 2, 8, 32, 16, 32

    key = jax.random.PRNGKey(0)
    k_q, k_v, k_w1, k_b1, k_vw, k_vb = jax.random.split(key, 6)

    query = jax.random.normal(k_q, (B, S, IN), dtype=jnp.float32)
    values = jax.random.normal(k_v, (B, S, DV), dtype=jnp.float32)

    # PyTorch-style uniform(-1/sqrt(fan_in), 1/sqrt(fan_in)) init.
    lim1 = 1.0 / jnp.sqrt(jnp.float32(IN))
    limv = 1.0 / jnp.sqrt(jnp.float32(OUT))
    w1 = jax.random.uniform(k_w1, (IN, OUT), jnp.float32, -lim1, lim1)
    b1 = jax.random.uniform(k_b1, (OUT,), jnp.float32, -lim1, lim1)
    vw = jax.random.uniform(k_vw, (OUT, 1), jnp.float32, -limv, limv)
    vb = jax.random.uniform(k_vb, (1,), jnp.float32, -limv, limv)

    ctx_ref, score_ref = _reference(query, values, w1, b1, vw, vb)

    # 1) strict check on the pure-f32 path
    ctx32, score32 = self_attention(query, values, w1, b1, vw, vb,
                                    use_bf16=False)
    ctx32 = jax.block_until_ready(ctx32)
    score32 = jax.block_until_ready(score32)
    assert jnp.allclose(ctx32, ctx_ref, atol=1e-5, rtol=1e-5), "f32 context mismatch"
    assert jnp.allclose(score32, score_ref, atol=1e-5, rtol=1e-5), "f32 score mismatch"

    # 2) default path (bf16 query/values streams): looser tolerance
    ctx, score = self_attention(query, values, w1, b1, vw, vb)
    ctx = jax.block_until_ready(ctx)
    score = jax.block_until_ready(score)
    assert jnp.allclose(ctx, ctx_ref, atol=6e-2, rtol=6e-2), "bf16 context mismatch"
    assert jnp.allclose(score, score_ref, atol=6e-2, rtol=6e-2), "bf16 score mismatch"

    print("KERNEL_OK")
</pallas_src>

<mosaic_0001>
module attributes {stable_mosaic.version = 11 : i64} {
  func.func @_self_attention_kernel(%arg0: i32, %arg1: memref<2x8x32xf32, #tpu.memory_space<vmem>>, %arg2: memref<2x8x32xf32, #tpu.memory_space<vmem>>, %arg3: memref<32x16xf32, #tpu.memory_space<vmem>>, %arg4: memref<1x16xf32, #tpu.memory_space<vmem>>, %arg5: memref<1x16xf32, #tpu.memory_space<vmem>>, %arg6: memref<1x1xf32, #tpu.memory_space<vmem>>, %arg7: memref<2x32xf32, #tpu.memory_space<vmem>>, %arg8: memref<2x8xf32, #tpu.memory_space<vmem>>) attributes {dimension_semantics = [#tpu.dimension_semantics<parallel>], iteration_bounds = array<i64: 1>, scalar_prefetch = 0 : i64, scratch_operands = 0 : i64, tpu.core_type = #tpu.core_type<tc>, window_params = [{transform_indices = @transform_0, window_bounds = array<i64: 2, 8, 32>}, {transform_indices = @transform_1, window_bounds = array<i64: 2, 8, 32>}, {pipeline_mode = #tpu.pipeline_mode<synchronous>, transform_indices = @transform_2, window_bounds = array<i64: 32, 16>}, {pipeline_mode = #tpu.pipeline_mode<synchronous>, transform_indices = @transform_3, window_bounds = array<i64: 1, 16>}, {pipeline_mode = #tpu.pipeline_mode<synchronous>, transform_indices = @transform_4, window_bounds = array<i64: 1, 16>}, {pipeline_mode = #tpu.pipeline_mode<synchronous>, transform_indices = @transform_5, window_bounds = array<i64: 1, 1>}, {transform_indices = @transform_6, window_bounds = array<i64: 2, 32>}, {transform_indices = @transform_7, window_bounds = array<i64: 2, 8>}]} {
    %c0 = arith.constant 0 : index
    %c0_0 = arith.constant 0 : index
    %c0_1 = arith.constant 0 : index
    %0 = vector.load %arg1[%c0, %c0_0, %c0_1] : memref<2x8x32xf32, #tpu.memory_space<vmem>>, vector<2x8x32xf32>
    %1 = vector.shape_cast %0 : vector<2x8x32xf32> to vector<16x32xf32>
    %c0_2 = arith.constant 0 : index
    %c0_3 = arith.constant 0 : index
    %2 = vector.load %arg3[%c0_2, %c0_3] : memref<32x16xf32, #tpu.memory_space<vmem>>, vector<32x16xf32>
    %cst = arith.constant dense<0.000000e+00> : vector<16x16xf32>
    %3 = tpu.matmul %1, %2, %cst {dimension_numbers = #tpu.dot_dimension_numbers<[1], [0], [0], [1], [0, 0, 1, 1], [], []>} : vector<16x32xf32>, vector<32x16xf32>, vector<16x16xf32> -> vector<16x16xf32>
    %c0_4 = arith.constant 0 : index
    %c0_5 = arith.constant 0 : index
    %4 = vector.load %arg4[%c0_4, %c0_5] : memref<1x16xf32, #tpu.memory_space<vmem>>, vector<1x16xf32>
    %5 = vector.broadcast %4 : vector<1x16xf32> to vector<16x16xf32>
    %6 = arith.addf %3, %5 : vector<16x16xf32>
    %7 = math.tanh %6 : vector<16x16xf32>
    %c0_6 = arith.constant 0 : index
    %c0_7 = arith.constant 0 : index
    %8 = vector.load %arg5[%c0_6, %c0_7] : memref<1x16xf32, #tpu.memory_space<vmem>>, vector<1x16xf32>
    %9 = vector.broadcast %8 : vector<1x16xf32> to vector<16x16xf32>
    %10 = arith.mulf %7, %9 : vector<16x16xf32>
    %cst_8 = arith.constant dense<0.000000e+00> : vector<16xf32>
    %11 = vector.multi_reduction <add>, %10, %cst_8 [1] : vector<16x16xf32> to vector<16xf32>
    %12 = vector.shape_cast %11 : vector<16xf32> to vector<16x1xf32>
    %c0_9 = arith.constant 0 : index
    %c0_10 = arith.constant 0 : index
    %13 = vector.load %arg6[%c0_9, %c0_10] : memref<1x1xf32, #tpu.memory_space<vmem>>, vector<1x1xf32>
    %14 = vector.broadcast %13 : vector<1x1xf32> to vector<16x1xf32>
    %15 = arith.addf %12, %14 : vector<16x1xf32>
    %16 = arith.negf %15 : vector<16x1xf32>
    %17 = math.exp %16 : vector<16x1xf32>
    %cst_11 = arith.constant 1.000000e+00 : f32
    %18 = vector.broadcast %cst_11 : f32 to vector<16x1xf32>
    %19 = arith.addf %18, %17 : vector<16x1xf32>
    %20 = arith.divf %18, %19 : vector<16x1xf32>
    %21 = vector.shape_cast %20 : vector<16x1xf32> to vector<2x8x1xf32>
    %cst_12 = arith.constant dense<0.000000e+00> : vector<2x1xf32>
    %22 = vector.multi_reduction <add>, %21, %cst_12 [1] : vector<2x8x1xf32> to vector<2x1xf32>
    %23 = vector.shape_cast %22 : vector<2x1xf32> to vector<2x1x1xf32>
    %24 = tpu.reciprocal %23 : vector<2x1x1xf32> -> vector<2x1x1xf32>
    %25 = vector.broadcast %24 : vector<2x1x1xf32> to vector<2x8x1xf32>
    %26 = arith.mulf %21, %25 : vector<2x8x1xf32>
    %c0_13 = arith.constant 0 : index
    %c0_14 = arith.constant 0 : index
    %c0_15 = arith.constant 0 : index
    %27 = vector.load %arg2[%c0_13, %c0_14, %c0_15] : memref<2x8x32xf32, #tpu.memory_space<vmem>>, vector<2x8x32xf32>
    %28 = vector.broadcast %26 : vector<2x8x1xf32> to vector<2x8x32xf32>
    %29 = arith.mulf %28, %27 : vector<2x8x32xf32>
    %cst_16 = arith.constant dense<0.000000e+00> : vector<2x32xf32>
    %30 = vector.multi_reduction <add>, %29, %cst_16 [1] : vector<2x8x32xf32> to vector<2x32xf32>
    %c0_17 = arith.constant 0 : index
    %c0_18 = arith.constant 0 : index
    %31 = vector.load %arg7[%c0_17, %c0_18] : memref<2x32xf32, #tpu.memory_space<vmem>>, vector<2x32xf32>
    tpu.vector_store %arg7[%c0_17, %c0_18], %30 {strides = array<i32>} : memref<2x32xf32, #tpu.memory_space<vmem>>, vector<2x32xf32>,
    %32 = vector.shape_cast %21 : vector<2x8x1xf32> to vector<2x8xf32>
    %c0_19 = arith.constant 0 : index
    %c0_20 = arith.constant 0 : index
    %33 = vector.load %arg8[%c0_19, %c0_20] : memref<2x8xf32, #tpu.memory_space<vmem>>, vector<2x8xf32>
    tpu.vector_store %arg8[%c0_19, %c0_20], %32 {strides = array<i32>} : memref<2x8xf32, #tpu.memory_space<vmem>>, vector<2x8xf32>,
    return
  }
  func.func @transform_0(%arg0: i32) -> (i32, i32, i32) {
    %c0_i32 = arith.constant 0 : i32
    %c0_i32_0 = arith.constant 0 : i32
    %c0_i32_1 = arith.constant 0 : i32
    return %arg0, %c0_i32, %c0_i32_0 : i32, i32, i32
  }
  func.func @transform_1(%arg0: i32) -> (i32, i32, i32) {
    %c0_i32 = arith.constant 0 : i32
    %c0_i32_0 = arith.constant 0 : i32
    %c0_i32_1 = arith.constant 0 : i32
    return %arg0, %c0_i32, %c0_i32_0 : i32, i32, i32
  }
  func.func @transform_2(%arg0: i32) -> (i32, i32) {
    %c0_i32 = arith.constant 0 : i32
    %c0_i32_0 = arith.constant 0 : i32
    %c0_i32_1 = arith.constant 0 : i32
    return %c0_i32, %c0_i32_0 : i32, i32
  }
  func.func @transform_3(%arg0: i32) -> (i32, i32) {
    %c0_i32 = arith.constant 0 : i32
    %c0_i32_0 = arith.constant 0 : i32
    %c0_i32_1 = arith.constant 0 : i32
    return %c0_i32, %c0_i32_0 : i32, i32
  }
  func.func @transform_4(%arg0: i32) -> (i32, i32) {
    %c0_i32 = arith.constant 0 : i32
    %c0_i32_0 = arith.constant 0 : i32
    %c0_i32_1 = arith.constant 0 : i32
    return %c0_i32, %c0_i32_0 : i32, i32
  }
  func.func @transform_5(%arg0: i32) -> (i32, i32) {
    %c0_i32 = arith.constant 0 : i32
    %c0_i32_0 = arith.constant 0 : i32
    %c0_i32_1 = arith.constant 0 : i32
    return %c0_i32, %c0_i32_0 : i32, i32
  }
  func.func @transform_6(%arg0: i32) -> (i32, i32) {
    %c0_i32 = arith.constant 0 : i32
    %c0_i32_0 = arith.constant 0 : i32
    return %arg0, %c0_i32 : i32, i32
  }
  func.func @transform_7(%arg0: i32) -> (i32, i32) {
    %c0_i32 = arith.constant 0 : i32
    %c0_i32_0 = arith.constant 0 : i32
    return %arg0, %c0_i32 : i32, i32
  }
}

</mosaic_0001>

<llo_original>
// kernel: tpu_custom_call.1
$region0: #{tpu_custom_call.1}
  #allocation0 [shape = 'u32[]', space=smem, size = 0x4, offset = 0x4, fixed_abs, tag = 'smem constant byte address 0x4 - core index']
  #allocation1 [shape = 'u32[144,128]{1,0:T(1,128)}', space=vmem, size = 0x12000, scoped, tag = 'internal scratch']
  #allocation2 [shape = 'f32[1,1]{1,0:T(1,128)S(1)}', space=vmem, size = 0x200, scoped, tag = 'scoped memory for tpu_custom_call.1']
  %s0 = inlined_call_operand.vmem [shape: f32[2,8,32], index: 0, kind: input, shape index: {}]
  %s1 = inlined_call_operand.vmem [shape: f32[2,8,32], index: 1, kind: input, shape index: {}]
  %s2 = inlined_call_operand.vmem [shape: f32[32,16], index: 2, kind: input, shape index: {}]
  %s3 = inlined_call_operand.vmem [shape: f32[1,16], index: 3, kind: input, shape index: {}]
  %s4 = inlined_call_operand.vmem [shape: f32[1,16], index: 4, kind: input, shape index: {}]
  %s5 = inlined_call_operand.<no memory space> [shape: f32[1,1], index: 5, kind: input, shape index: {}]
  %s6 = inlined_call_operand.hbm [shape: f32[2,32], index: 6, kind: output, shape index: {0}]
  %s7 = inlined_call_operand.hbm [shape: f32[2,8], index: 7, kind: output, shape index: {1}]
  %8 = xla_tuple %s6, %s7
  %s9 = sld [smem:[#allocation0]]
  $region42: #{tpu_custom_call.1} parent=0
    _
  %s11 = ssub.s32 1, %s9
  %s12 = scalar_select 0, %s11, %s9
  %v13 = vstv %s5
  %14 = vst [vmem:[#allocation2] sm:$0x1] %v13
  $region1: #{tpu_custom_call.1} parent=0
    #allocation3 [shape = 'u8[1024]{0}', space=vmem, size = 0x400, scoped, tag = 'output window, operand 0, single buffered']
    #allocation4 [shape = 's32[1]{0}', space=sflag, size = 0x4, scoped, tag = 'scoped memory for tpu_custom_call.1']
    #allocation5 [shape = 'u8[1024]{0}', space=vmem, size = 0x400, scoped, tag = 'output window, operand 1, single buffered']
    #allocation6 [shape = 's32[1]{0}', space=sflag, size = 0x4, scoped, tag = 'scoped memory for tpu_custom_call.1']
    %15 = vsyncpa [#allocation4], 0
    %16 = vsyncpa [#allocation6], 0
    // Predicated region
    $region2: #{tpu_custom_call.1} parent=1 // pred_check
      _
    $region3: #{tpu_custom_call.1} parent=1 // pred_check_branch
      %18 = sbr.rel (0) target = $region5
    $region4: #{tpu_custom_call.1} parent=1 // pred_region
      _
    $region5: #{tpu_custom_call.1} parent=1 // pred_fallthru
      _
    // Predicated region
    $region6: #{tpu_custom_call.1} parent=1 // pred_check
      _
    $region7: #{tpu_custom_call.1} parent=1 // pred_check_branch
      %20 = sbr.rel (0) target = $region9
    $region8: #{tpu_custom_call.1} parent=1 // pred_region
      _
    $region9: #{tpu_custom_call.1} parent=1 // pred_fallthru
      _
    // Predicated region
    $region10: #{tpu_custom_call.1} parent=1 // pred_check
      _
    $region11: #{tpu_custom_call.1} parent=1 // pred_check_branch
      %22 = sbr.rel (0) target = $region13
    $region12: #{tpu_custom_call.1} parent=1 // pred_region
      _
    $region13: #{tpu_custom_call.1} parent=1 // pred_fallthru
      _
    // Predicated region
    $region14: #{tpu_custom_call.1} parent=1 // pred_check
      _
    $region15: #{tpu_custom_call.1} parent=1 // pred_check_branch
      %24 = sbr.rel (0) target = $region17
    $region16: #{tpu_custom_call.1} parent=1 // pred_region
      _
    $region17: #{tpu_custom_call.1} parent=1 // pred_fallthru
      _
    // Predicated region
    $region18: #{tpu_custom_call.1} parent=1 // pred_check
      _
    $region19: #{tpu_custom_call.1} parent=1 // pred_check_branch
      %26 = sbr.rel (0) target = $region21
    $region20: #{tpu_custom_call.1} parent=1 // pred_region
      _
    $region21: #{tpu_custom_call.1} parent=1 // pred_fallthru
      _
    // Predicated region
    $region22: #{tpu_custom_call.1} parent=1 // pred_check
      _
    $region23: #{tpu_custom_call.1} parent=1 // pred_check_branch
      %28 = sbr.rel (0) target = $region25
    $region24: #{tpu_custom_call.1} parent=1 // pred_region
      _
    $region25: #{tpu_custom_call.1} parent=1 // pred_fallthru
      _
    %v29 = vld [vmem:[%s0] sm:$0xff]
    %v30 = vld [vmem:[%s0 + $0x8] sm:$0xff]
    %v31 = vld [vmem:[%s2] sm:$0xff]
    %v32 = vld [vmem:[%s2 + $0x8] sm:$0xff]
    %v33 = vld [vmem:[%s2 + $0x10] sm:$0xff]
    %v34 = vld [vmem:[%s2 + $0x18] sm:$0xff]
    %v35 = vld [vmem:[%s3] sm:$0x1]
    %v37 = vlaneseq
    %v38 = vshrl.u32 %v37, 7
    %v39 = vsub.s32 0, %v38
    %v40 = vrot.slane %v35, %v39
    %vm42 = vcmask 261120
    %v44 = vsel %vm42, %v29, 0
    %v47 = vsel %vm42, %v30, 0
    %49 = vmatprep.subr.mxu0 0.0
    %50 = vmatpush1.msra.mxu0 0.0
    %51 = vmatprep.subr.mxu0 0.0
    %52 = vmatpush1.msra.mxu0 0.0
    %53 = vmatprep.subr.mxu0 0.0
    %54 = vmatpush1.msra.mxu0 0.0
    %55 = vmatprep.subr.mxu0 0.0
    %56 = vmatpush1.msra.mxu0 0.0
    %57 = vmatprep.subr.mxu0 0.0
    %58 = vmatpush1.msra.mxu0 0.0
    %59 = vmatprep.subr.mxu0 0.0
    %60 = vmatpush1.msra.mxu0 0.0
    %61 = vmatprep.subr.mxu0 0.0
    %62 = vmatpush1.msra.mxu0 0.0
    %63 = vmatprep.subr.mxu0 0.0
    %64 = vmatpush1.msra.mxu0 0.0
    %65 = vmatprep.subr.mxu0 0.0
    %66 = vmatpush1.msra.mxu0 0.0
    %67 = vmatprep.subr.mxu0 0.0
    %68 = vmatpush1.msra.mxu0 0.0
    %69 = vmatprep.subr.mxu0 0.0
    %70 = vmatpush1.msra.mxu0 0.0
    %71 = vmatprep.subr.mxu0 0.0
    %72 = vmatpush1.msra.mxu0 0.0
    %73 = vmatprep.subr.mxu0 0.0
    %74 = vmatpush1.msra.mxu0 %v34
    %75 = vmatprep.subr.mxu0 0.0
    %76 = vmatpush1.msra.mxu0 %v33
    %77 = vmatprep.subr.mxu0 0.0
    %78 = vmatpush1.msra.mxu0 %v32
    %79 = vmatprep.subr.mxu0 0.0
    %80 = vmatpush1.msra.mxu0 %v31
    %81 = vmatprep.subr.mxu0 0.0
    %82 = vmatpush2.msra.mxu0 0.0
    %83 = vmatprep.subr.mxu0 0.0
    %84 = vmatpush2.msra.mxu0 0.0
    %85 = vmatprep.subr.mxu0 0.0
    %86 = vmatpush2.msra.mxu0 0.0
    %87 = vmatprep.subr.mxu0 0.0
    %88 = vmatpush2.msra.mxu0 0.0
    %89 = vmatprep.subr.mxu0 0.0
    %90 = vmatpush2.msra.mxu0 0.0
    %91 = vmatprep.subr.mxu0 0.0
    %92 = vmatpush2.msra.mxu0 0.0
    %93 = vmatprep.subr.mxu0 0.0
    %94 = vmatpush2.msra.mxu0 0.0
    %95 = vmatprep.subr.mxu0 0.0
    %96 = vmatpush2.msra.mxu0 0.0
    %97 = vmatprep.subr.mxu0 0.0
    %98 = vmatpush2.msra.mxu0 0.0
    %99 = vmatprep.subr.mxu0 0.0
    %100 = vmatpush2.msra.mxu0 0.0
    %101 = vmatprep.subr.mxu0 0.0
    %102 = vmatpush2.msra.mxu0 0.0
    %103 = vmatprep.subr.mxu0 0.0
    %104 = vmatpush2.msra.mxu0 0.0
    %105 = vmatprep.subr.mxu0 0.0
    %106 = vmatpush2.msra.mxu0 0.0
    %107 = vmatprep.subr.mxu0 0.0
    %108 = vmatpush2.msra.mxu0 0.0
    %109 = vmatprep.subr.mxu0 0.0
    %110 = vmatpush2.msra.mxu0 0.0
    %111 = vmatprep.subr.mxu0 0.0
    %112 = vmatpush2.msra.mxu0 0.0
    %113 = vmatprep.mubr.f32.mxu0 0.0
    %114 = vmatmul.mubr.f32.gmra.mxu0 %v44
    %v115 = vpop.f32.mrf.mxu0
    %v116 = vadd.f32 %v40, %v115
    %v117 = vpop.f32.mrf.mxu0
    %118 = vmatprep.mubr.f32.mxu0 0.0
    %119 = vmatmul.mubr.f32.gmra.mxu0 %v47
    %v120 = vpop.f32.mrf.mxu0
    %v121 = vadd.f32 %v40, %v120
    %v122 = vpop.f32.mrf.mxu0
    %123 = vdwg.mxu0
    %v124 = vtanh.pop %v116
    %v125 = vtanh.pop %v121
    %v126 = vld [vmem:[%s4] sm:$0x1]
    %v128 = vlaneseq
    %v129 = vshrl.u32 %v128, 7
    %v130 = vsub.s32 0, %v129
    %v131 = vrot.slane %v126, %v130
    %v133 = vmul.f32 %v124, %v131
    %v134 = vmul.f32 %v125, %v131
    %vm135 = vcmask 130048
    %v136 = vsel %vm135, %v133, 0.0
    %137 = vadd.xlane.f32.xlu0 %v136
    %v138 = vpop.xlane.xlu0 %137
    %v139 = vsel %vm135, %v134, 0.0
    %140 = vadd.xlane.f32.xlu0 %v139
    %v141 = vpop.xlane.xlu0 %140
    %v142 = vld [vmem:[#allocation2] sm:$0x1]
    %v144 = vlaneseq
    %v145 = vshrl.u32 %v144, 7
    %v146 = vsub.s32 0, %v145
    %v147 = vrot.slane %v142, %v146
    %v149 = vadd.f32 %v138, %v147
    %v150 = vadd.f32 %v141, %v147
    %v151 = vxor.u32 %v149, 2147483648
    %v152 = vxor.u32 %v150, 2147483648
    %v153 = vmul.f32 %v151, 1.442695
    %v154 = vpow.pop %v153
    %v155 = vmul.f32 %v152, 1.442695
    %v156 = vpow.pop %v155
    %v157 = vadd.f32 %v154, 1.0
    %v158 = vadd.f32 %v156, 1.0
    %v159 = vrcp.pop %v157
    %v160 = vmul.f32 1.0, %v159
    %v161 = vrcp.pop %v158
    %v162 = vmul.f32 1.0, %v161
    %vm163 = vcmask 7168
    %v164 = vsel %vm163, %v160, 0.0
    %v165 = vrot.slane %v164, 4
    %v166 = vadd.f32 %v164, %v165
    %v167 = vrot.slane %v166, 2
    %v168 = vadd.f32 %v166, %v167
    %v169 = vrot.slane %v168, 1
    %v170 = vadd.f32 %v168, %v169
    %v171 = vsel %vm163, %v162, 0.0
    %v172 = vrot.slane %v171, 4
    %v173 = vadd.f32 %v171, %v172
    %v174 = vrot.slane %v173, 2
    %v175 = vadd.f32 %v173, %v174
    %v176 = vrot.slane %v175, 1
    %v177 = vadd.f32 %v175, %v176
    %v178 = vrcp.pop %v170
    %v179 = vrcp.pop %v177
    %v180 = vmul.f32 %v160, %v178
    %v181 = vmul.f32 %v162, %v179
    %v182 = vld [vmem:[%s1] sm:$0xff]
    %v183 = vld [vmem:[%s1 + $0x8] sm:$0xff]
    %185 = vset.pattern.permute.xlu0 0
    %186 = vperm.xlu0 %185, %v180
    %v187 = vpop.permute.xlu0 %186
    %190 = vset.pattern.permute.xlu0 0
    %191 = vperm.xlu0 %190, %v181
    %v192 = vpop.permute.xlu0 %191
    %v194 = vmul.f32 %v187, %v182
    %v195 = vmul.f32 %v192, %v183
    %v196 = vsel %vm42, %v194, 0.0
    %v197 = vrot.slane %v196, 4
    %v198 = vadd.f32 %v196, %v197
    %v199 = vrot.slane %v198, 2
    %v200 = vadd.f32 %v198, %v199
    %v201 = vrot.slane %v200, 1
    %v202 = vadd.f32 %v200, %v201
    %v203 = vsel %vm42, %v195, 0.0
    %v204 = vrot.slane %v203, 4
    %v205 = vadd.f32 %v203, %v204
    %v206 = vrot.slane %v205, 2
    %v207 = vadd.f32 %v205, %v206
    %v208 = vrot.slane %v207, 1
    %v209 = vadd.f32 %v207, %v208
    %vm212 = vcmask 1041409
    %v213 = vsel %vm212, %v209, %v202
    %vm215 = vcmask 254976
    %216 = vst.msk [vmem:[#allocation3] sm:$0x3] %vm215, %v213
    %219 = vset.pattern.permute.xlu0 0
    %220 = vperm.xlu0 %219, %v160
    %v221 = vpop.permute.xlu0 %220
    %222 = vset.pattern.permute.xlu0 0
    %223 = vperm.xlu0 %222, %v162
    %v224 = vpop.permute.xlu0 %223
    %v225 = vlaneseq
    %v226 = vand.u32 %v225, 127
    %v227 = vlaneseq
    %v228 = vshrl.u32 %v227, 7
    %v229 = vsub.s32 %v226, %v228
    %v230 = vrot.slane %v221, %v229
    %v231 = vlaneseq
    %v232 = vshrl.u32 %v231, 7
    %v233 = vsub.s32 %v226, %v232
    %v234 = vrot.slane %v224, %v233
    %v235 = vsel %vm212, %v234, %v230
    %vm237 = vcmask 58368
    %238 = vst.msk [vmem:[#allocation5] sm:$0x3] %vm237, %v235
    // Predicated region
    $region26: #{tpu_custom_call.1} parent=1 // pred_check
      _
    $region27: #{tpu_custom_call.1} parent=1 // pred_check_branch
      %240 = sbr.rel (0) target = $region29
    $region28: #{tpu_custom_call.1} parent=1 // pred_region
      %s242 = ssub.s32 32, 32
      %243 = vsyncadd [#allocation4], %s242
      %s245 = sshll.u32 [#allocation3], 4
      %s246 = int_to_ptr.vmem [resolvable:$true] %s245
      %248 = dma.vmem_to_hbm [thread:$0]  %s246, 32, %s6, [#allocation4]
    $region29: #{tpu_custom_call.1} parent=1 // pred_fallthru
      _
    // Predicated region
    $region30: #{tpu_custom_call.1} parent=1 // pred_check
      _
    $region31: #{tpu_custom_call.1} parent=1 // pred_check_branch
      %250 = sbr.rel (0) target = $region33
    $region32: #{tpu_custom_call.1} parent=1 // pred_region
      %s252 = ssub.s32 32, 32
      %253 = vsyncadd [#allocation6], %s252
      %s255 = sshll.u32 [#allocation5], 4
      %s256 = int_to_ptr.vmem [resolvable:$true] %s255
      %258 = dma.vmem_to_hbm [thread:$0]  %s256, 32, %s7, [#allocation6]
    $region33: #{tpu_custom_call.1} parent=1 // pred_fallthru
      _
    // Predicated region
    $region34: #{tpu_custom_call.1} parent=1 // pred_check
      _
    $region35: #{tpu_custom_call.1} parent=1 // pred_check_branch
      %260 = sbr.rel (0) target = $region37
    $region36: #{tpu_custom_call.1} parent=1 // pred_region
      %261 = dma.done [#allocation4], 32
    $region37: #{tpu_custom_call.1} parent=1 // pred_fallthru
      _
    // Predicated region
    $region38: #{tpu_custom_call.1} parent=1 // pred_check
      _
    $region39: #{tpu_custom_call.1} parent=1 // pred_check_branch
      %263 = sbr.rel (0) target = $region41
    $region40: #{tpu_custom_call.1} parent=1 // pred_region
      %264 = dma.done [#allocation6], 32
    $region41: #{tpu_custom_call.1} parent=1 // pred_fallthru
      _
    %265 = vsyncpa [#allocation4], 1
    %266 = vsyncpa [#allocation6], 1

</llo_original>
